<compile_context>
chip_gen: v6e
topology: v6e:2x2x1
jax: 0.10.0
libtpu: 0.0.40
codegen_flags: <defaults>
</compile_context>

<pallas_src>
import jax
import jax.numpy as jnp
from jax.experimental import pallas as pl
from jax.experimental.pallas import tpu as pltpu

_SUB = 8  # f32 sublane tile


def mlp_kernel(x_ref, w1_ref, b1_ref, w2_ref, b2_ref, w3_ref, b3_ref, o_ref):
    # x:  (8, TN) f32   sublane+lane dense batch tile
    # w1: (H, 1) f32    b1: (H, 1) f32
    # w2: (H, H) bf16   (out, in) layout        b2: (H, 1) f32
    # w3: (H, 1) f32    b3: (1, 1) f32
    # o:  (8, TN) f32
    w1 = w1_ref[...]
    b1 = b1_ref[...]
    w2 = w2_ref[...]
    b2 = b2_ref[...]
    w3 = w3_ref[...]
    b3 = b3_ref[...]

    # Static unroll over the 8 batch sublanes; each pass handles a (1, TN)
    # lane group, so the hidden dim H stays on the sublane axis for the MXU.
    for s in range(_SUB):
        xs = x_ref[s:s + 1, :]                                    # (1, TN)

        # Layer 1: K=1 "matmul" == VPU broadcast multiply-add (kept f32).
        h1 = jnp.maximum(w1 * xs + b1, 0.0)                       # (H, TN)

        # Layer 2: the only matmul worth the MXU; bf16 operands, f32 accum.
        h2 = jnp.dot(w2, h1.astype(jnp.bfloat16),
                     preferred_element_type=jnp.float32)          # (H, TN)
        h2 = jnp.maximum(h2 + b2, 0.0)

        # Layer 3: out_features=1 -> VPU multiply + sublane (XLU) reduce.
        y = jnp.sum(h2 * w3, axis=0, keepdims=True) + b3          # (1, TN)

        o_ref[s:s + 1, :] = y.astype(o_ref.dtype)


def _lane_tiling(n, tile_n):
    """Pick (eff_tile, n_tiles, lanes_pad) for n scalars packed as (8, lanes)."""
    lanes = max(1, pl.cdiv(n, _SUB))
    lanes_128 = pl.cdiv(lanes, 128) * 128            # round up to lane tile
    eff_tile = max(128, (min(tile_n, lanes_128) // 128) * 128)
    n_tiles = pl.cdiv(lanes_128, eff_tile)
    # v7x megacore: a single big tile leaves the 2nd TensorCore idle; split
    # into >=2 grid steps whenever there are at least two 128-lane tiles.
    if n_tiles == 1 and lanes_128 >= 256:
        eff_tile = pl.cdiv(lanes_128 // 2, 128) * 128
        n_tiles = pl.cdiv(lanes_128, eff_tile)
    return eff_tile, n_tiles, n_tiles * eff_tile


def modelo_prediccion_forward(x, params, tile_n=512):
    """x: (N, 1) float32. params: PyTorch-layout weights (see init_params)."""
    w1, b1, w2, b2, w3, b3 = (params[k] for k in ("w1", "b1", "w2", "b2", "w3", "b3"))
    N = x.shape[0]
    H = w2.shape[0]

    eff_tile, n_tiles, lanes_pad = _lane_tiling(N, tile_n)
    n_pad = _SUB * lanes_pad

    # Sublane+lane dense batch: (N, 1) -> (8, lanes_pad).
    x_packed = jnp.pad(x[:, 0], (0, n_pad - N)).reshape(_SUB, lanes_pad)

    # Cast the MXU weight once on the host; everything else stays f32.
    w2_bf16 = w2.astype(jnp.bfloat16)

    resident = lambda shape: pl.BlockSpec(shape, lambda i: (0, 0))
    # TODO(synk): for large H (H^2 * bytes approaching the scoped-VMEM limit,
    # especially v7x's 64 MiB), single-buffer the resident weights
    # (pipeline_mode=pl.Buffered(1) / vmem_limit_bytes) and K-tile w2 over an
    # extra "arbitrary" grid axis with a VMEM accumulator.

    out_packed = pl.pallas_call(
        mlp_kernel,
        out_shape=jax.ShapeDtypeStruct((_SUB, lanes_pad), jnp.float32),
        grid_spec=pl.GridSpec(
            grid=(n_tiles,),
            in_specs=[
                pl.BlockSpec((_SUB, eff_tile), lambda i: (0, i)),  # x tile (pipelined)
                resident((H, 1)),                                  # w1
                resident((H, 1)),                                  # b1
                resident((H, H)),                                  # w2 (bf16, resident)
                resident((H, 1)),                                  # b2
                resident((H, 1)),                                  # w3
                resident((1, 1)),                                  # b3
            ],
            out_specs=pl.BlockSpec((_SUB, eff_tile), lambda i: (0, i)),
        ),
        compiler_params=pltpu.CompilerParams(
            dimension_semantics=("parallel",),                     # megacore on v7x
        ),
    )(x_packed, w1, b1, w2_bf16, b2, w3, b3)

    return out_packed.reshape(n_pad)[:N].reshape(N, 1)


def init_params(key, unidades_ocultas):
    """Deterministic init mimicking nn.Linear's U(-1/sqrt(fan_in), 1/sqrt(fan_in)).
    Weights stored PyTorch-style (out_features, in_features); biases as columns."""
    H = unidades_ocultas
    k = jax.random.split(key, 6)

    def unif(kk, shape, fan_in):
        bound = 1.0 / jnp.sqrt(jnp.float32(fan_in))
        return jax.random.uniform(kk, shape, jnp.float32, -bound, bound)

    return {
        "w1": unif(k[0], (H, 1), 1),   # Linear(1, H).weight   -> (H, 1)
        "b1": unif(k[1], (H, 1), 1),
        "w2": unif(k[2], (H, H), H),   # Linear(H, H).weight   -> (out, in)
        "b2": unif(k[3], (H, 1), H),
        "w3": unif(k[4], (H, 1), H),   # Linear(H, 1).weight^T -> (H, 1)
        "b3": unif(k[5], (1, 1), H),
    }


def reference_forward(x, p):
    # Standard (N, features) f32 reference matching the PyTorch module.
    h1 = jnp.maximum(x @ p["w1"].T + p["b1"].T, 0.0)   # (N, H)
    h2 = jnp.maximum(h1 @ p["w2"].T + p["b2"].T, 0.0)  # (N, H)
    return h2 @ p["w3"] + p["b3"]                      # (N, 1)


if __name__ == "__main__":
    key = jax.random.PRNGKey(0)
    k_x, k_x2, k_p = jax.random.split(key, 3)

    H = 32  # unidades_ocultas
    params = init_params(k_p, H)

    # bf16 MXU operands with f32 accumulation -> loosen tolerance vs f32 ref.
    tol = dict(atol=2e-2, rtol=2e-2)

    # Small demo batch (launch-bound; grid=(1,)), matching the module's usage.
    x_small = jax.random.normal(k_x, (8, 1), jnp.float32)
    out_small = jax.block_until_ready(modelo_prediccion_forward(x_small, params))
    assert out_small.shape == (8, 1)
    assert jnp.allclose(out_small, reference_forward(x_small, params), **tol)

    # Larger batch exercising the multi-tile grid + padding path.
    x_big = jax.random.normal(k_x2, (5000, 1), jnp.float32)
    out_big = jax.block_until_ready(modelo_prediccion_forward(x_big, params))
    assert out_big.shape == (5000, 1)
    assert jnp.allclose(out_big, reference_forward(x_big, params), **tol)

    print("KERNEL_OK")
</pallas_src>

<mosaic_0001>
module attributes {stable_mosaic.version = 11 : i64} {
  func.func @mlp_kernel(%arg0: i32, %arg1: memref<8x128xf32, #tpu.memory_space<vmem>>, %arg2: memref<32x1xf32, #tpu.memory_space<vmem>>, %arg3: memref<32x1xf32, #tpu.memory_space<vmem>>, %arg4: memref<32x32xbf16, #tpu.memory_space<vmem>>, %arg5: memref<32x1xf32, #tpu.memory_space<vmem>>, %arg6: memref<32x1xf32, #tpu.memory_space<vmem>>, %arg7: memref<1x1xf32, #tpu.memory_space<vmem>>, %arg8: memref<8x128xf32, #tpu.memory_space<vmem>>) attributes {dimension_semantics = [#tpu.dimension_semantics<parallel>], iteration_bounds = array<i64: 1>, scalar_prefetch = 0 : i64, scratch_operands = 0 : i64, tpu.core_type = #tpu.core_type<tc>, window_params = [{transform_indices = @transform_0, window_bounds = array<i64: 8, 128>}, {pipeline_mode = #tpu.pipeline_mode<synchronous>, transform_indices = @transform_1, window_bounds = array<i64: 32, 1>}, {pipeline_mode = #tpu.pipeline_mode<synchronous>, transform_indices = @transform_2, window_bounds = array<i64: 32, 1>}, {pipeline_mode = #tpu.pipeline_mode<synchronous>, transform_indices = @transform_3, window_bounds = array<i64: 32, 32>}, {pipeline_mode = #tpu.pipeline_mode<synchronous>, transform_indices = @transform_4, window_bounds = array<i64: 32, 1>}, {pipeline_mode = #tpu.pipeline_mode<synchronous>, transform_indices = @transform_5, window_bounds = array<i64: 32, 1>}, {pipeline_mode = #tpu.pipeline_mode<synchronous>, transform_indices = @transform_6, window_bounds = array<i64: 1, 1>}, {transform_indices = @transform_7, window_bounds = array<i64: 8, 128>}]} {
    %c0 = arith.constant 0 : index
    %c0_0 = arith.constant 0 : index
    %0 = vector.load %arg2[%c0, %c0_0] : memref<32x1xf32, #tpu.memory_space<vmem>>, vector<32x1xf32>
    %c0_1 = arith.constant 0 : index
    %c0_2 = arith.constant 0 : index
    %1 = vector.load %arg3[%c0_1, %c0_2] : memref<32x1xf32, #tpu.memory_space<vmem>>, vector<32x1xf32>
    %c0_3 = arith.constant 0 : index
    %c0_4 = arith.constant 0 : index
    %2 = vector.load %arg4[%c0_3, %c0_4] : memref<32x32xbf16, #tpu.memory_space<vmem>>, vector<32x32xbf16>
    %c0_5 = arith.constant 0 : index
    %c0_6 = arith.constant 0 : index
    %3 = vector.load %arg5[%c0_5, %c0_6] : memref<32x1xf32, #tpu.memory_space<vmem>>, vector<32x1xf32>
    %c0_7 = arith.constant 0 : index
    %c0_8 = arith.constant 0 : index
    %4 = vector.load %arg6[%c0_7, %c0_8] : memref<32x1xf32, #tpu.memory_space<vmem>>, vector<32x1xf32>
    %c0_9 = arith.constant 0 : index
    %c0_10 = arith.constant 0 : index
    %5 = vector.load %arg7[%c0_9, %c0_10] : memref<1x1xf32, #tpu.memory_space<vmem>>, vector<1x1xf32>
    %c0_11 = arith.constant 0 : index
    %c0_12 = arith.constant 0 : index
    %6 = vector.load %arg1[%c0_11, %c0_12] : memref<8x128xf32, #tpu.memory_space<vmem>>, vector<1x128xf32>
    %7 = vector.broadcast %0 : vector<32x1xf32> to vector<32x128xf32>
    %8 = vector.broadcast %6 : vector<1x128xf32> to vector<32x128xf32>
    %9 = arith.mulf %7, %8 : vector<32x128xf32>
    %10 = vector.broadcast %1 : vector<32x1xf32> to vector<32x128xf32>
    %11 = arith.addf %9, %10 : vector<32x128xf32>
    %cst = arith.constant 0.000000e+00 : f32
    %12 = vector.broadcast %cst : f32 to vector<32x128xf32>
    %13 = arith.maximumf %11, %12 : vector<32x128xf32>
    %14 = arith.truncf %13 : vector<32x128xf32> to vector<32x128xbf16>
    %cst_13 = arith.constant dense<0.000000e+00> : vector<32x128xf32>
    %15 = tpu.matmul %2, %14, %cst_13 {dimension_numbers = #tpu.dot_dimension_numbers<[1], [0], [0], [1], [0, 0, 1, 1], [], []>} : vector<32x32xbf16>, vector<32x128xbf16>, vector<32x128xf32> -> vector<32x128xf32>
    %16 = vector.broadcast %3 : vector<32x1xf32> to vector<32x128xf32>
    %17 = arith.addf %15, %16 : vector<32x128xf32>
    %cst_14 = arith.constant 0.000000e+00 : f32
    %18 = vector.broadcast %cst_14 : f32 to vector<32x128xf32>
    %19 = arith.maximumf %17, %18 : vector<32x128xf32>
    %20 = vector.broadcast %4 : vector<32x1xf32> to vector<32x128xf32>
    %21 = arith.mulf %19, %20 : vector<32x128xf32>
    %cst_15 = arith.constant dense<0.000000e+00> : vector<128xf32>
    %22 = vector.multi_reduction <add>, %21, %cst_15 [0] : vector<32x128xf32> to vector<128xf32>
    %23 = vector.shape_cast %22 : vector<128xf32> to vector<1x128xf32>
    %24 = vector.broadcast %5 : vector<1x1xf32> to vector<1x128xf32>
    %25 = arith.addf %23, %24 : vector<1x128xf32>
    %c0_16 = arith.constant 0 : index
    %c0_17 = arith.constant 0 : index
    %26 = vector.load %arg8[%c0_16, %c0_17] : memref<8x128xf32, #tpu.memory_space<vmem>>, vector<1x128xf32>
    tpu.vector_store %arg8[%c0_16, %c0_17], %25 {strides = array<i32>} : memref<8x128xf32, #tpu.memory_space<vmem>>, vector<1x128xf32>,
    %c1 = arith.constant 1 : index
    %c0_18 = arith.constant 0 : index
    %27 = vector.load %arg1[%c1, %c0_18] : memref<8x128xf32, #tpu.memory_space<vmem>>, vector<1x128xf32>
    %28 = vector.broadcast %0 : vector<32x1xf32> to vector<32x128xf32>
    %29 = vector.broadcast %27 : vector<1x128xf32> to vector<32x128xf32>
    %30 = arith.mulf %28, %29 : vector<32x128xf32>
    %31 = vector.broadcast %1 : vector<32x1xf32> to vector<32x128xf32>
    %32 = arith.addf %30, %31 : vector<32x128xf32>
    %cst_19 = arith.constant 0.000000e+00 : f32
    %33 = vector.broadcast %cst_19 : f32 to vector<32x128xf32>
    %34 = arith.maximumf %32, %33 : vector<32x128xf32>
    %35 = arith.truncf %34 : vector<32x128xf32> to vector<32x128xbf16>
    %cst_20 = arith.constant dense<0.000000e+00> : vector<32x128xf32>
    %36 = tpu.matmul %2, %35, %cst_20 {dimension_numbers = #tpu.dot_dimension_numbers<[1], [0], [0], [1], [0, 0, 1, 1], [], []>} : vector<32x32xbf16>, vector<32x128xbf16>, vector<32x128xf32> -> vector<32x128xf32>
    %37 = vector.broadcast %3 : vector<32x1xf32> to vector<32x128xf32>
    %38 = arith.addf %36, %37 : vector<32x128xf32>
    %cst_21 = arith.constant 0.000000e+00 : f32
    %39 = vector.broadcast %cst_21 : f32 to vector<32x128xf32>
    %40 = arith.maximumf %38, %39 : vector<32x128xf32>
    %41 = vector.broadcast %4 : vector<32x1xf32> to vector<32x128xf32>
    %42 = arith.mulf %40, %41 : vector<32x128xf32>
    %cst_22 = arith.constant dense<0.000000e+00> : vector<128xf32>
    %43 = vector.multi_reduction <add>, %42, %cst_22 [0] : vector<32x128xf32> to vector<128xf32>
    %44 = vector.shape_cast %43 : vector<128xf32> to vector<1x128xf32>
    %45 = vector.broadcast %5 : vector<1x1xf32> to vector<1x128xf32>
    %46 = arith.addf %44, %45 : vector<1x128xf32>
    %c1_23 = arith.constant 1 : index
    %c0_24 = arith.constant 0 : index
    %47 = vector.load %arg8[%c1_23, %c0_24] : memref<8x128xf32, #tpu.memory_space<vmem>>, vector<1x128xf32>
    tpu.vector_store %arg8[%c1_23, %c0_24], %46 {strides = array<i32>} : memref<8x128xf32, #tpu.memory_space<vmem>>, vector<1x128xf32>,
    %c2 = arith.constant 2 : index
    %c0_25 = arith.constant 0 : index
    %48 = vector.load %arg1[%c2, %c0_25] : memref<8x128xf32, #tpu.memory_space<vmem>>, vector<1x128xf32>
    %49 = vector.broadcast %0 : vector<32x1xf32> to vector<32x128xf32>
    %50 = vector.broadcast %48 : vector<1x128xf32> to vector<32x128xf32>
    %51 = arith.mulf %49, %50 : vector<32x128xf32>
    %52 = vector.broadcast %1 : vector<32x1xf32> to vector<32x128xf32>
    %53 = arith.addf %51, %52 : vector<32x128xf32>
    %cst_26 = arith.constant 0.000000e+00 : f32
    %54 = vector.broadcast %cst_26 : f32 to vector<32x128xf32>
    %55 = arith.maximumf %53, %54 : vector<32x128xf32>
    %56 = arith.truncf %55 : vector<32x128xf32> to vector<32x128xbf16>
    %cst_27 = arith.constant dense<0.000000e+00> : vector<32x128xf32>
    %57 = tpu.matmul %2, %56, %cst_27 {dimension_numbers = #tpu.dot_dimension_numbers<[1], [0], [0], [1], [0, 0, 1, 1], [], []>} : vector<32x32xbf16>, vector<32x128xbf16>, vector<32x128xf32> -> vector<32x128xf32>
    %58 = vector.broadcast %3 : vector<32x1xf32> to vector<32x128xf32>
    %59 = arith.addf %57, %58 : vector<32x128xf32>
    %cst_28 = arith.constant 0.000000e+00 : f32
    %60 = vector.broadcast %cst_28 : f32 to vector<32x128xf32>
    %61 = arith.maximumf %59, %60 : vector<32x128xf32>
    %62 = vector.broadcast %4 : vector<32x1xf32> to vector<32x128xf32>
    %63 = arith.mulf %61, %62 : vector<32x128xf32>
    %cst_29 = arith.constant dense<0.000000e+00> : vector<128xf32>
    %64 = vector.multi_reduction <add>, %63, %cst_29 [0] : vector<32x128xf32> to vector<128xf32>
    %65 = vector.shape_cast %64 : vector<128xf32> to vector<1x128xf32>
    %66 = vector.broadcast %5 : vector<1x1xf32> to vector<1x128xf32>
    %67 = arith.addf %65, %66 : vector<1x128xf32>
    %c2_30 = arith.constant 2 : index
    %c0_31 = arith.constant 0 : index
    %68 = vector.load %arg8[%c2_30, %c0_31] : memref<8x128xf32, #tpu.memory_space<vmem>>, vector<1x128xf32>
    tpu.vector_store %arg8[%c2_30, %c0_31], %67 {strides = array<i32>} : memref<8x128xf32, #tpu.memory_space<vmem>>, vector<1x128xf32>,
    %c3 = arith.constant 3 : index
    %c0_32 = arith.constant 0 : index
    %69 = vector.load %arg1[%c3, %c0_32] : memref<8x128xf32, #tpu.memory_space<vmem>>, vector<1x128xf32>
    %70 = vector.broadcast %0 : vector<32x1xf32> to vector<32x128xf32>
    %71 = vector.broadcast %69 : vector<1x128xf32> to vector<32x128xf32>
    %72 = arith.mulf %70, %71 : vector<32x128xf32>
    %73 = vector.broadcast %1 : vector<32x1xf32> to vector<32x128xf32>
    %74 = arith.addf %72, %73 : vector<32x128xf32>
    %cst_33 = arith.constant 0.000000e+00 : f32
    %75 = vector.broadcast %cst_33 : f32 to vector<32x128xf32>
    %76 = arith.maximumf %74, %75 : vector<32x128xf32>
    %77 = arith.truncf %76 : vector<32x128xf32> to vector<32x128xbf16>
    %cst_34 = arith.constant dense<0.000000e+00> : vector<32x128xf32>
    %78 = tpu.matmul %2, %77, %cst_34 {dimension_numbers = #tpu.dot_dimension_numbers<[1], [0], [0], [1], [0, 0, 1, 1], [], []>} : vector<32x32xbf16>, vector<32x128xbf16>, vector<32x128xf32> -> vector<32x128xf32>
    %79 = vector.broadcast %3 : vector<32x1xf32> to vector<32x128xf32>
    %80 = arith.addf %78, %79 : vector<32x128xf32>
    %cst_35 = arith.constant 0.000000e+00 : f32
    %81 = vector.broadcast %cst_35 : f32 to vector<32x128xf32>
    %82 = arith.maximumf %80, %81 : vector<32x128xf32>
    %83 = vector.broadcast %4 : vector<32x1xf32> to vector<32x128xf32>
    %84 = arith.mulf %82, %83 : vector<32x128xf32>
    %cst_36 = arith.constant dense<0.000000e+00> : vector<128xf32>
    %85 = vector.multi_reduction <add>, %84, %cst_36 [0] : vector<32x128xf32> to vector<128xf32>
    %86 = vector.shape_cast %85 : vector<128xf32> to vector<1x128xf32>
    %87 = vector.broadcast %5 : vector<1x1xf32> to vector<1x128xf32>
    %88 = arith.addf %86, %87 : vector<1x128xf32>
    %c3_37 = arith.constant 3 : index
    %c0_38 = arith.constant 0 : index
    %89 = vector.load %arg8[%c3_37, %c0_38] : memref<8x128xf32, #tpu.memory_space<vmem>>, vector<1x128xf32>
    tpu.vector_store %arg8[%c3_37, %c0_38], %88 {strides = array<i32>} : memref<8x128xf32, #tpu.memory_space<vmem>>, vector<1x128xf32>,
    %c4 = arith.constant 4 : index
    %c0_39 = arith.constant 0 : index
    %90 = vector.load %arg1[%c4, %c0_39] : memref<8x128xf32, #tpu.memory_space<vmem>>, vector<1x128xf32>
    %91 = vector.broadcast %0 : vector<32x1xf32> to vector<32x128xf32>
    %92 = vector.broadcast %90 : vector<1x128xf32> to vector<32x128xf32>
    %93 = arith.mulf %91, %92 : vector<32x128xf32>
    %94 = vector.broadcast %1 : vector<32x1xf32> to vector<32x128xf32>
    %95 = arith.addf %93, %94 : vector<32x128xf32>
    %cst_40 = arith.constant 0.000000e+00 : f32
    %96 = vector.broadcast %cst_40 : f32 to vector<32x128xf32>
    %97 = arith.maximumf %95, %96 : vector<32x128xf32>
    %98 = arith.truncf %97 : vector<32x128xf32> to vector<32x128xbf16>
    %cst_41 = arith.constant dense<0.000000e+00> : vector<32x128xf32>
    %99 = tpu.matmul %2, %98, %cst_41 {dimension_numbers = #tpu.dot_dimension_numbers<[1], [0], [0], [1], [0, 0, 1, 1], [], []>} : vector<32x32xbf16>, vector<32x128xbf16>, vector<32x128xf32> -> vector<32x128xf32>
    %100 = vector.broadcast %3 : vector<32x1xf32> to vector<32x128xf32>
    %101 = arith.addf %99, %100 : vector<32x128xf32>
    %cst_42 = arith.constant 0.000000e+00 : f32
    %102 = vector.broadcast %cst_42 : f32 to vector<32x128xf32>
    %103 = arith.maximumf %101, %102 : vector<32x128xf32>
    %104 = vector.broadcast %4 : vector<32x1xf32> to vector<32x128xf32>
    %105 = arith.mulf %103, %104 : vector<32x128xf32>
    %cst_43 = arith.constant dense<0.000000e+00> : vector<128xf32>
    %106 = vector.multi_reduction <add>, %105, %cst_43 [0] : vector<32x128xf32> to vector<128xf32>
    %107 = vector.shape_cast %106 : vector<128xf32> to vector<1x128xf32>
    %108 = vector.broadcast %5 : vector<1x1xf32> to vector<1x128xf32>
    %109 = arith.addf %107, %108 : vector<1x128xf32>
    %c4_44 = arith.constant 4 : index
    %c0_45 = arith.constant 0 : index
    %110 = vector.load %arg8[%c4_44, %c0_45] : memref<8x128xf32, #tpu.memory_space<vmem>>, vector<1x128xf32>
    tpu.vector_store %arg8[%c4_44, %c0_45], %109 {strides = array<i32>} : memref<8x128xf32, #tpu.memory_space<vmem>>, vector<1x128xf32>,
    %c5 = arith.constant 5 : index
    %c0_46 = arith.constant 0 : index
    %111 = vector.load %arg1[%c5, %c0_46] : memref<8x128xf32, #tpu.memory_space<vmem>>, vector<1x128xf32>
    %112 = vector.broadcast %0 : vector<32x1xf32> to vector<32x128xf32>
    %113 = vector.broadcast %111 : vector<1x128xf32> to vector<32x128xf32>
    %114 = arith.mulf %112, %113 : vector<32x128xf32>
    %115 = vector.broadcast %1 : vector<32x1xf32> to vector<32x128xf32>
    %116 = arith.addf %114, %115 : vector<32x128xf32>
    %cst_47 = arith.constant 0.000000e+00 : f32
    %117 = vector.broadcast %cst_47 : f32 to vector<32x128xf32>
    %118 = arith.maximumf %116, %117 : vector<32x128xf32>
    %119 = arith.truncf %118 : vector<32x128xf32> to vector<32x128xbf16>
    %cst_48 = arith.constant dense<0.000000e+00> : vector<32x128xf32>
    %120 = tpu.matmul %2, %119, %cst_48 {dimension_numbers = #tpu.dot_dimension_numbers<[1], [0], [0], [1], [0, 0, 1, 1], [], []>} : vector<32x32xbf16>, vector<32x128xbf16>, vector<32x128xf32> -> vector<32x128xf32>
    %121 = vector.broadcast %3 : vector<32x1xf32> to vector<32x128xf32>
    %122 = arith.addf %120, %121 : vector<32x128xf32>
    %cst_49 = arith.constant 0.000000e+00 : f32
    %123 = vector.broadcast %cst_49 : f32 to vector<32x128xf32>
    %124 = arith.maximumf %122, %123 : vector<32x128xf32>
    %125 = vector.broadcast %4 : vector<32x1xf32> to vector<32x128xf32>
    %126 = arith.mulf %124, %125 : vector<32x128xf32>
    %cst_50 = arith.constant dense<0.000000e+00> : vector<128xf32>
    %127 = vector.multi_reduction <add>, %126, %cst_50 [0] : vector<32x128xf32> to vector<128xf32>
    %128 = vector.shape_cast %127 : vector<128xf32> to vector<1x128xf32>
    %129 = vector.broadcast %5 : vector<1x1xf32> to vector<1x128xf32>
    %130 = arith.addf %128, %129 : vector<1x128xf32>
    %c5_51 = arith.constant 5 : index
    %c0_52 = arith.constant 0 : index
    %131 = vector.load %arg8[%c5_51, %c0_52] : memref<8x128xf32, #tpu.memory_space<vmem>>, vector<1x128xf32>
    tpu.vector_store %arg8[%c5_51, %c0_52], %130 {strides = array<i32>} : memref<8x128xf32, #tpu.memory_space<vmem>>, vector<1x128xf32>,
    %c6 = arith.constant 6 : index
    %c0_53 = arith.constant 0 : index
    %132 = vector.load %arg1[%c6, %c0_53] : memref<8x128xf32, #tpu.memory_space<vmem>>, vector<1x128xf32>
    %133 = vector.broadcast %0 : vector<32x1xf32> to vector<32x128xf32>
    %134 = vector.broadcast %132 : vector<1x128xf32> to vector<32x128xf32>
    %135 = arith.mulf %133, %134 : vector<32x128xf32>
    %136 = vector.broadcast %1 : vector<32x1xf32> to vector<32x128xf32>
    %137 = arith.addf %135, %136 : vector<32x128xf32>
    %cst_54 = arith.constant 0.000000e+00 : f32
    %138 = vector.broadcast %cst_54 : f32 to vector<32x128xf32>
    %139 = arith.maximumf %137, %138 : vector<32x128xf32>
    %140 = arith.truncf %139 : vector<32x128xf32> to vector<32x128xbf16>
    %cst_55 = arith.constant dense<0.000000e+00> : vector<32x128xf32>
    %141 = tpu.matmul %2, %140, %cst_55 {dimension_numbers = #tpu.dot_dimension_numbers<[1], [0], [0], [1], [0, 0, 1, 1], [], []>} : vector<32x32xbf16>, vector<32x128xbf16>, vector<32x128xf32> -> vector<32x128xf32>
    %142 = vector.broadcast %3 : vector<32x1xf32> to vector<32x128xf32>
    %143 = arith.addf %141, %142 : vector<32x128xf32>
    %cst_56 = arith.constant 0.000000e+00 : f32
    %144 = vector.broadcast %cst_56 : f32 to vector<32x128xf32>
    %145 = arith.maximumf %143, %144 : vector<32x128xf32>
    %146 = vector.broadcast %4 : vector<32x1xf32> to vector<32x128xf32>
    %147 = arith.mulf %145, %146 : vector<32x128xf32>
    %cst_57 = arith.constant dense<0.000000e+00> : vector<128xf32>
    %148 = vector.multi_reduction <add>, %147, %cst_57 [0] : vector<32x128xf32> to vector<128xf32>
    %149 = vector.shape_cast %148 : vector<128xf32> to vector<1x128xf32>
    %150 = vector.broadcast %5 : vector<1x1xf32> to vector<1x128xf32>
    %151 = arith.addf %149, %150 : vector<1x128xf32>
    %c6_58 = arith.constant 6 : index
    %c0_59 = arith.constant 0 : index
    %152 = vector.load %arg8[%c6_58, %c0_59] : memref<8x128xf32, #tpu.memory_space<vmem>>, vector<1x128xf32>
    tpu.vector_store %arg8[%c6_58, %c0_59], %151 {strides = array<i32>} : memref<8x128xf32, #tpu.memory_space<vmem>>, vector<1x128xf32>,
    %c7 = arith.constant 7 : index
    %c0_60 = arith.constant 0 : index
    %153 = vector.load %arg1[%c7, %c0_60] : memref<8x128xf32, #tpu.memory_space<vmem>>, vector<1x128xf32>
    %154 = vector.broadcast %0 : vector<32x1xf32> to vector<32x128xf32>
    %155 = vector.broadcast %153 : vector<1x128xf32> to vector<32x128xf32>
    %156 = arith.mulf %154, %155 : vector<32x128xf32>
    %157 = vector.broadcast %1 : vector<32x1xf32> to vector<32x128xf32>
    %158 = arith.addf %156, %157 : vector<32x128xf32>
    %cst_61 = arith.constant 0.000000e+00 : f32
    %159 = vector.broadcast %cst_61 : f32 to vector<32x128xf32>
    %160 = arith.maximumf %158, %159 : vector<32x128xf32>
    %161 = arith.truncf %160 : vector<32x128xf32> to vector<32x128xbf16>
    %cst_62 = arith.constant dense<0.000000e+00> : vector<32x128xf32>
    %162 = tpu.matmul %2, %161, %cst_62 {dimension_numbers = #tpu.dot_dimension_numbers<[1], [0], [0], [1], [0, 0, 1, 1], [], []>} : vector<32x32xbf16>, vector<32x128xbf16>, vector<32x128xf32> -> vector<32x128xf32>
    %163 = vector.broadcast %3 : vector<32x1xf32> to vector<32x128xf32>
    %164 = arith.addf %162, %163 : vector<32x128xf32>
    %cst_63 = arith.constant 0.000000e+00 : f32
    %165 = vector.broadcast %cst_63 : f32 to vector<32x128xf32>
    %166 = arith.maximumf %164, %165 : vector<32x128xf32>
    %167 = vector.broadcast %4 : vector<32x1xf32> to vector<32x128xf32>
    %168 = arith.mulf %166, %167 : vector<32x128xf32>
    %cst_64 = arith.constant dense<0.000000e+00> : vector<128xf32>
    %169 = vector.multi_reduction <add>, %168, %cst_64 [0] : vector<32x128xf32> to vector<128xf32>
    %170 = vector.shape_cast %169 : vector<128xf32> to vector<1x128xf32>
    %171 = vector.broadcast %5 : vector<1x1xf32> to vector<1x128xf32>
    %172 = arith.addf %170, %171 : vector<1x128xf32>
    %c7_65 = arith.constant 7 : index
    %c0_66 = arith.constant 0 : index
    %173 = vector.load %arg8[%c7_65, %c0_66] : memref<8x128xf32, #tpu.memory_space<vmem>>, vector<1x128xf32>
    tpu.vector_store %arg8[%c7_65, %c0_66], %172 {strides = array<i32>} : memref<8x128xf32, #tpu.memory_space<vmem>>, vector<1x128xf32>,
    return
  }
  func.func @transform_0(%arg0: i32) -> (i32, i32) {
    %c0_i32 = arith.constant 0 : i32
    %c0_i32_0 = arith.constant 0 : i32
    return %c0_i32, %arg0 : i32, i32
  }
  func.func @transform_1(%arg0: i32) -> (i32, i32) {
    %c0_i32 = arith.constant 0 : i32
    %c0_i32_0 = arith.constant 0 : i32
    %c0_i32_1 = arith.constant 0 : i32
    return %c0_i32, %c0_i32_0 : i32, i32
  }
  func.func @transform_2(%arg0: i32) -> (i32, i32) {
    %c0_i32 = arith.constant 0 : i32
    %c0_i32_0 = arith.constant 0 : i32
    %c0_i32_1 = arith.constant 0 : i32
    return %c0_i32, %c0_i32_0 : i32, i32
  }
  func.func @transform_3(%arg0: i32) -> (i32, i32) {
    %c0_i32 = arith.constant 0 : i32
    %c0_i32_0 = arith.constant 0 : i32
    %c0_i32_1 = arith.constant 0 : i32
    return %c0_i32, %c0_i32_0 : i32, i32
  }
  func.func @transform_4(%arg0: i32) -> (i32, i32) {
    %c0_i32 = arith.constant 0 : i32
    %c0_i32_0 = arith.constant 0 : i32
    %c0_i32_1 = arith.constant 0 : i32
    return %c0_i32, %c0_i32_0 : i32, i32
  }
  func.func @transform_5(%arg0: i32) -> (i32, i32) {
    %c0_i32 = arith.constant 0 : i32
    %c0_i32_0 = arith.constant 0 : i32
    %c0_i32_1 = arith.constant 0 : i32
    return %c0_i32, %c0_i32_0 : i32, i32
  }
  func.func @transform_6(%arg0: i32) -> (i32, i32) {
    %c0_i32 = arith.constant 0 : i32
    %c0_i32_0 = arith.constant 0 : i32
    %c0_i32_1 = arith.constant 0 : i32
    return %c0_i32, %c0_i32_0 : i32, i32
  }
  func.func @transform_7(%arg0: i32) -> (i32, i32) {
    %c0_i32 = arith.constant 0 : i32
    %c0_i32_0 = arith.constant 0 : i32
    return %c0_i32, %arg0 : i32, i32
  }
}

</mosaic_0001>

<llo_original>
// kernel: tpu_custom_call.1
$region0: #{tpu_custom_call.1}
  #allocation0 [shape = 'u32[]', space=smem, size = 0x4, offset = 0x4, fixed_abs, tag = 'smem constant byte address 0x4 - core index']
  #allocation1 [shape = 'u32[144,128]{1,0:T(1,128)}', space=vmem, size = 0x12000, scoped, tag = 'internal scratch']
  #allocation2 [shape = 'f32[1,1]{1,0:T(1,128)S(1)}', space=vmem, size = 0x200, scoped, tag = 'scoped memory for tpu_custom_call.1']
  %s0 = inlined_call_operand.vmem [shape: f32[8,128], index: 0, kind: input, shape index: {}]
  %s1 = inlined_call_operand.vmem [shape: f32[32,1], index: 1, kind: input, shape index: {}]
  %s2 = inlined_call_operand.vmem [shape: f32[32,1], index: 2, kind: input, shape index: {}]
  %s3 = inlined_call_operand.vmem [shape: bf16[32,32], index: 3, kind: input, shape index: {}]
  %s4 = inlined_call_operand.vmem [shape: f32[32,1], index: 4, kind: input, shape index: {}]
  %s5 = inlined_call_operand.vmem [shape: f32[32,1], index: 5, kind: input, shape index: {}]
  %s6 = inlined_call_operand.<no memory space> [shape: f32[1,1], index: 6, kind: input, shape index: {}]
  %s7 = inlined_call_operand.hbm [shape: f32[8,128], index: 7, kind: output, shape index: {}]
  %s8 = sld [smem:[#allocation0]]
  $region38: #{tpu_custom_call.1} parent=0
    _
  %s10 = ssub.s32 1, %s8
  %s11 = scalar_select 0, %s10, %s8
  %v12 = vstv %s6
  %13 = vst [vmem:[#allocation2] sm:$0x1] %v12
  $region1: #{tpu_custom_call.1} parent=0
    #allocation3 [shape = 'u8[4096]{0}', space=vmem, size = 0x1000, scoped, tag = 'output window, operand 0, single buffered']
    #allocation4 [shape = 's32[1]{0}', space=sflag, size = 0x4, scoped, tag = 'scoped memory for tpu_custom_call.1']
    %14 = vsyncpa [#allocation4], 0
    // Predicated region
    $region2: #{tpu_custom_call.1} parent=1 // pred_check
      _
    $region3: #{tpu_custom_call.1} parent=1 // pred_check_branch
      %16 = sbr.rel (0) target = $region5
    $region4: #{tpu_custom_call.1} parent=1 // pred_region
      _
    $region5: #{tpu_custom_call.1} parent=1 // pred_fallthru
      _
    // Predicated region
    $region6: #{tpu_custom_call.1} parent=1 // pred_check
      _
    $region7: #{tpu_custom_call.1} parent=1 // pred_check_branch
      %18 = sbr.rel (0) target = $region9
    $region8: #{tpu_custom_call.1} parent=1 // pred_region
      _
    $region9: #{tpu_custom_call.1} parent=1 // pred_fallthru
      _
    // Predicated region
    $region10: #{tpu_custom_call.1} parent=1 // pred_check
      _
    $region11: #{tpu_custom_call.1} parent=1 // pred_check_branch
      %20 = sbr.rel (0) target = $region13
    $region12: #{tpu_custom_call.1} parent=1 // pred_region
      _
    $region13: #{tpu_custom_call.1} parent=1 // pred_fallthru
      _
    // Predicated region
    $region14: #{tpu_custom_call.1} parent=1 // pred_check
      _
    $region15: #{tpu_custom_call.1} parent=1 // pred_check_branch
      %22 = sbr.rel (0) target = $region17
    $region16: #{tpu_custom_call.1} parent=1 // pred_region
      _
    $region17: #{tpu_custom_call.1} parent=1 // pred_fallthru
      _
    // Predicated region
    $region18: #{tpu_custom_call.1} parent=1 // pred_check
      _
    $region19: #{tpu_custom_call.1} parent=1 // pred_check_branch
      %24 = sbr.rel (0) target = $region21
    $region20: #{tpu_custom_call.1} parent=1 // pred_region
      _
    $region21: #{tpu_custom_call.1} parent=1 // pred_fallthru
      _
    // Predicated region
    $region22: #{tpu_custom_call.1} parent=1 // pred_check
      _
    $region23: #{tpu_custom_call.1} parent=1 // pred_check_branch
      %26 = sbr.rel (0) target = $region25
    $region24: #{tpu_custom_call.1} parent=1 // pred_region
      _
    $region25: #{tpu_custom_call.1} parent=1 // pred_fallthru
      _
    // Predicated region
    $region26: #{tpu_custom_call.1} parent=1 // pred_check
      _
    $region27: #{tpu_custom_call.1} parent=1 // pred_check_branch
      %28 = sbr.rel (0) target = $region29
    $region28: #{tpu_custom_call.1} parent=1 // pred_region
      _
    $region29: #{tpu_custom_call.1} parent=1 // pred_fallthru
      _
    %v30 = vld [vmem:[%s1] sm:$0xff]
    %v31 = vld [vmem:[%s1 + $0x8] sm:$0xff]
    %v32 = vld [vmem:[%s1 + $0x10] sm:$0xff]
    %v33 = vld [vmem:[%s1 + $0x18] sm:$0xff]
    %v34 = vld [vmem:[%s2] sm:$0xff]
    %v35 = vld [vmem:[%s2 + $0x8] sm:$0xff]
    %v36 = vld [vmem:[%s2 + $0x10] sm:$0xff]
    %v37 = vld [vmem:[%s2 + $0x18] sm:$0xff]
    %v38 = vld [vmem:[%s3] sm:$0xf]
    %v39 = vld [vmem:[%s3 + $0x4] sm:$0xf]
    %v40 = vld [vmem:[%s3 + $0x8] sm:$0xf]
    %v41 = vld [vmem:[%s3 + $0xc] sm:$0xf]
    %v42 = vld [vmem:[%s4] sm:$0xff]
    %v43 = vld [vmem:[%s4 + $0x8] sm:$0xff]
    %v44 = vld [vmem:[%s4 + $0x10] sm:$0xff]
    %v45 = vld [vmem:[%s4 + $0x18] sm:$0xff]
    %v46 = vld [vmem:[%s5] sm:$0xff]
    %v47 = vld [vmem:[%s5 + $0x8] sm:$0xff]
    %v48 = vld [vmem:[%s5 + $0x10] sm:$0xff]
    %v49 = vld [vmem:[%s5 + $0x18] sm:$0xff]
    %v50 = vld [vmem:[#allocation2] sm:$0x1]
    %v51 = vld [vmem:[%s0] sm:$0x1]
    %53 = vset.pattern.permute.xlu0 0
    %54 = vperm.xlu0 %53, %v30
    %v55 = vpop.permute.xlu0 %54
    %58 = vset.pattern.permute.xlu0 0
    %59 = vperm.xlu0 %58, %v31
    %v60 = vpop.permute.xlu0 %59
    %63 = vset.pattern.permute.xlu0 0
    %64 = vperm.xlu0 %63, %v32
    %v65 = vpop.permute.xlu0 %64
    %68 = vset.pattern.permute.xlu0 0
    %69 = vperm.xlu0 %68, %v33
    %v70 = vpop.permute.xlu0 %69
    %v72 = vlaneseq
    %v73 = vshrl.u32 %v72, 7
    %v74 = vsub.s32 0, %v73
    %v75 = vrot.slane %v51, %v74
    %v76 = vmul.f32 %v55, %v75
    %v77 = vmul.f32 %v60, %v75
    %v78 = vmul.f32 %v65, %v75
    %v79 = vmul.f32 %v70, %v75
    %81 = vset.pattern.permute.xlu0 0
    %82 = vperm.xlu0 %81, %v34
    %v83 = vpop.permute.xlu0 %82
    %86 = vset.pattern.permute.xlu0 0
    %87 = vperm.xlu0 %86, %v35
    %v88 = vpop.permute.xlu0 %87
    %91 = vset.pattern.permute.xlu0 0
    %92 = vperm.xlu0 %91, %v36
    %v93 = vpop.permute.xlu0 %92
    %96 = vset.pattern.permute.xlu0 0
    %97 = vperm.xlu0 %96, %v37
    %v98 = vpop.permute.xlu0 %97
    %v100 = vadd.f32 %v76, %v83
    %v101 = vadd.f32 %v77, %v88
    %v102 = vadd.f32 %v78, %v93
    %v103 = vadd.f32 %v79, %v98
    %v104 = vmax.f32 %v100, 0.0
    %v105 = vmax.f32 %v101, 0.0
    %v106 = vmax.f32 %v102, 0.0
    %v107 = vmax.f32 %v103, 0.0
    %v108 = vpack.c.bf16 %v105, %v104
    %v109 = vpack.c.bf16 %v107, %v106
    %111 = vset.pattern.permute.xlu0 0
    %112 = vperm.xlu0 %111, %v42
    %v113 = vpop.permute.xlu0 %112
    %116 = vset.pattern.permute.xlu0 0
    %117 = vperm.xlu0 %116, %v43
    %v118 = vpop.permute.xlu0 %117
    %121 = vset.pattern.permute.xlu0 0
    %122 = vperm.xlu0 %121, %v44
    %v123 = vpop.permute.xlu0 %122
    %126 = vset.pattern.permute.xlu0 0
    %127 = vperm.xlu0 %126, %v45
    %v128 = vpop.permute.xlu0 %127
    %v134 = vunpack.c.l.b16 %v38
    %v135 = vunpack.c.l.b16 %v39
    %v136 = vunpack.c.l.b16 %v40
    %v137 = vunpack.c.l.b16 %v41
    %v138 = vpack.c.b16 %v135, %v134
    %v139 = vpack.c.b16 %v137, %v136
    %vm140 = vcmask 261120
    %v142 = vsel %vm140, %v138, 0
    %v145 = vsel %vm140, %v139, 0
    %147 = vmatprep.subr.bf16.mxu0 0
    %148 = vmatpush1.bf16.msra.mxu0 0
    %149 = vmatprep.subr.bf16.mxu0 0
    %150 = vmatpush1.bf16.msra.mxu0 0
    %151 = vmatprep.subr.bf16.mxu0 0
    %152 = vmatpush1.bf16.msra.mxu0 0
    %153 = vmatprep.subr.bf16.mxu0 0
    %154 = vmatpush1.bf16.msra.mxu0 0
    %155 = vmatprep.subr.bf16.mxu0 0
    %156 = vmatpush1.bf16.msra.mxu0 0
    %157 = vmatprep.subr.bf16.mxu0 0
    %158 = vmatpush1.bf16.msra.mxu0 0
    %159 = vmatprep.subr.bf16.mxu0 0
    %160 = vmatpush1.bf16.msra.mxu0 %v109
    %161 = vmatprep.subr.bf16.mxu0 0
    %162 = vmatpush1.bf16.msra.mxu0 %v108
    %163 = vmatprep.subr.bf16.mxu0 0
    %164 = vmatpush2.bf16.msra.mxu0 0
    %165 = vmatprep.subr.bf16.mxu0 0
    %166 = vmatpush2.bf16.msra.mxu0 0
    %167 = vmatprep.subr.bf16.mxu0 0
    %168 = vmatpush2.bf16.msra.mxu0 0
    %169 = vmatprep.subr.bf16.mxu0 0
    %170 = vmatpush2.bf16.msra.mxu0 0
    %171 = vmatprep.subr.bf16.mxu0 0
    %172 = vmatpush2.bf16.msra.mxu0 0
    %173 = vmatprep.subr.bf16.mxu0 0
    %174 = vmatpush2.bf16.msra.mxu0 0
    %175 = vmatprep.subr.bf16.mxu0 0
    %176 = vmatpush2.bf16.msra.mxu0 0
    %177 = vmatprep.subr.bf16.mxu0 0
    %178 = vmatpush2.bf16.msra.mxu0 0
    %179 = vmatprep.mubr.bf16.mxu0 0
    %180 = vmatmul.mubr.bf16.gmra.mxu0 %v142
    %v181 = vpop.f32.mrf.mxu0
    %v182 = vadd.f32 %v113, %v181
    %v183 = vpop.f32.mrf.mxu0
    %v184 = vpop.f32.mrf.mxu0
    %v185 = vadd.f32 %v118, %v184
    %v186 = vpop.f32.mrf.mxu0
    %187 = vmatprep.mubr.bf16.mxu0 0
    %188 = vmatmul.mubr.bf16.gmra.mxu0 %v145
    %v189 = vpop.f32.mrf.mxu0
    %v190 = vadd.f32 %v123, %v189
    %v191 = vpop.f32.mrf.mxu0
    %v192 = vpop.f32.mrf.mxu0
    %v193 = vadd.f32 %v128, %v192
    %v194 = vpop.f32.mrf.mxu0
    %195 = vdwg.mxu0
    %v196 = vmax.f32 %v182, 0.0
    %v197 = vmax.f32 %v185, 0.0
    %v198 = vmax.f32 %v190, 0.0
    %v199 = vmax.f32 %v193, 0.0
    %201 = vset.pattern.permute.xlu0 0
    %202 = vperm.xlu0 %201, %v46
    %v203 = vpop.permute.xlu0 %202
    %206 = vset.pattern.permute.xlu0 0
    %207 = vperm.xlu0 %206, %v47
    %v208 = vpop.permute.xlu0 %207
    %211 = vset.pattern.permute.xlu0 0
    %212 = vperm.xlu0 %211, %v48
    %v213 = vpop.permute.xlu0 %212
    %216 = vset.pattern.permute.xlu0 0
    %217 = vperm.xlu0 %216, %v49
    %v218 = vpop.permute.xlu0 %217
    %v220 = vmul.f32 %v196, %v203
    %v221 = vmul.f32 %v197, %v208
    %v222 = vmul.f32 %v198, %v213
    %v223 = vmul.f32 %v199, %v218
    %v224 = vadd.f32 %v220, %v221
    %v225 = vadd.f32 %v224, %v222
    %v226 = vadd.f32 %v225, %v223
    %v227 = vrot.slane %v226, 4
    %v228 = vadd.f32 %v226, %v227
    %v229 = vrot.slane %v228, 2
    %v230 = vadd.f32 %v228, %v229
    %v231 = vrot.slane %v230, 1
    %v232 = vadd.f32 %v230, %v231
    %234 = vset.pattern.permute.xlu0 0
    %235 = vperm.xlu0 %234, %v50
    %v236 = vpop.permute.xlu0 %235
    %v238 = vlaneseq
    %v239 = vshrl.u32 %v238, 7
    %v240 = vsub.s32 0, %v239
    %v241 = vrot.slane %v236, %v240
    %v242 = vadd.f32 %v232, %v241
    %243 = vst [vmem:[#allocation3] sm:$0x1] %v242
    %v244 = vld [vmem:[%s0 + $0x1] sm:$0x1]
    %v245 = vlaneseq
    %v246 = vshrl.u32 %v245, 7
    %v247 = vsub.s32 0, %v246
    %v248 = vrot.slane %v244, %v247
    %v249 = vmul.f32 %v55, %v248
    %v250 = vmul.f32 %v60, %v248
    %v251 = vmul.f32 %v65, %v248
    %v252 = vmul.f32 %v70, %v248
    %v253 = vadd.f32 %v249, %v83
    %v254 = vadd.f32 %v250, %v88
    %v255 = vadd.f32 %v251, %v93
    %v256 = vadd.f32 %v252, %v98
    %v257 = vmax.f32 %v253, 0.0
    %v258 = vmax.f32 %v254, 0.0
    %v259 = vmax.f32 %v255, 0.0
    %v260 = vmax.f32 %v256, 0.0
    %v261 = vpack.c.bf16 %v258, %v257
    %v262 = vpack.c.bf16 %v260, %v259
    %263 = vmatprep.subr.bf16.mxu0 0
    %264 = vmatpush1.bf16.msra.mxu0 0
    %265 = vmatprep.subr.bf16.mxu0 0
    %266 = vmatpush1.bf16.msra.mxu0 0
    %267 = vmatprep.subr.bf16.mxu0 0
    %268 = vmatpush1.bf16.msra.mxu0 0
    %269 = vmatprep.subr.bf16.mxu0 0
    %270 = vmatpush1.bf16.msra.mxu0 0
    %271 = vmatprep.subr.bf16.mxu0 0
    %272 = vmatpush1.bf16.msra.mxu0 0
    %273 = vmatprep.subr.bf16.mxu0 0
    %274 = vmatpush1.bf16.msra.mxu0 0
    %275 = vmatprep.subr.bf16.mxu0 0
    %276 = vmatpush1.bf16.msra.mxu0 %v262
    %277 = vmatprep.subr.bf16.mxu0 0
    %278 = vmatpush1.bf16.msra.mxu0 %v261
    %279 = vmatprep.subr.bf16.mxu0 0
    %280 = vmatpush2.bf16.msra.mxu0 0
    %281 = vmatprep.subr.bf16.mxu0 0
    %282 = vmatpush2.bf16.msra.mxu0 0
    %283 = vmatprep.subr.bf16.mxu0 0
    %284 = vmatpush2.bf16.msra.mxu0 0
    %285 = vmatprep.subr.bf16.mxu0 0
    %286 = vmatpush2.bf16.msra.mxu0 0
    %287 = vmatprep.subr.bf16.mxu0 0
    %288 = vmatpush2.bf16.msra.mxu0 0
    %289 = vmatprep.subr.bf16.mxu0 0
    %290 = vmatpush2.bf16.msra.mxu0 0
    %291 = vmatprep.subr.bf16.mxu0 0
    %292 = vmatpush2.bf16.msra.mxu0 0
    %293 = vmatprep.subr.bf16.mxu0 0
    %294 = vmatpush2.bf16.msra.mxu0 0
    %295 = vmatprep.mubr.bf16.mxu0 0
    %296 = vmatmul.mubr.bf16.gmra.mxu0 %v142
    %v297 = vpop.f32.mrf.mxu0
    %v298 = vadd.f32 %v113, %v297
    %v299 = vpop.f32.mrf.mxu0
    %v300 = vpop.f32.mrf.mxu0
    %v301 = vadd.f32 %v118, %v300
    %v302 = vpop.f32.mrf.mxu0
    %303 = vmatprep.mubr.bf16.mxu0 0
    %304 = vmatmul.mubr.bf16.gmra.mxu0 %v145
    %v305 = vpop.f32.mrf.mxu0
    %v306 = vadd.f32 %v123, %v305
    %v307 = vpop.f32.mrf.mxu0
    %v308 = vpop.f32.mrf.mxu0
    %v309 = vadd.f32 %v128, %v308
    %v310 = vpop.f32.mrf.mxu0
    %311 = vdwg.mxu0
    %v312 = vmax.f32 %v298, 0.0
    %v313 = vmax.f32 %v301, 0.0
    %v314 = vmax.f32 %v306, 0.0
    %v315 = vmax.f32 %v309, 0.0
    %v316 = vmul.f32 %v312, %v203
    %v317 = vmul.f32 %v313, %v208
    %v318 = vmul.f32 %v314, %v213
    %v319 = vmul.f32 %v315, %v218
    %v320 = vadd.f32 %v316, %v317
    %v321 = vadd.f32 %v320, %v318
    %v322 = vadd.f32 %v321, %v319
    %v323 = vrot.slane %v322, 4
    %v324 = vadd.f32 %v322, %v323
    %v325 = vrot.slane %v324, 2
    %v326 = vadd.f32 %v324, %v325
    %v327 = vrot.slane %v326, 1
    %v328 = vadd.f32 %v326, %v327
    %v329 = vadd.f32 %v328, %v241
    %330 = vst [vmem:[#allocation3 + $0x1] sm:$0x1] %v329
    %v331 = vld [vmem:[%s0 + $0x2] sm:$0x1]
    %v332 = vlaneseq
    %v333 = vshrl.u32 %v332, 7
    %v334 = vsub.s32 0, %v333
    %v335 = vrot.slane %v331, %v334
    %v336 = vmul.f32 %v55, %v335
    %v337 = vmul.f32 %v60, %v335
    %v338 = vmul.f32 %v65, %v335
    %v339 = vmul.f32 %v70, %v335
    %v340 = vadd.f32 %v336, %v83
    %v341 = vadd.f32 %v337, %v88
    %v342 = vadd.f32 %v338, %v93
    %v343 = vadd.f32 %v339, %v98
    %v344 = vmax.f32 %v340, 0.0
    %v345 = vmax.f32 %v341, 0.0
    %v346 = vmax.f32 %v342, 0.0
    %v347 = vmax.f32 %v343, 0.0
    %v348 = vpack.c.bf16 %v345, %v344
    %v349 = vpack.c.bf16 %v347, %v346
    %350 = vmatprep.subr.bf16.mxu0 0
    %351 = vmatpush1.bf16.msra.mxu0 0
    %352 = vmatprep.subr.bf16.mxu0 0
    %353 = vmatpush1.bf16.msra.mxu0 0
    %354 = vmatprep.subr.bf16.mxu0 0
    %355 = vmatpush1.bf16.msra.mxu0 0
    %356 = vmatprep.subr.bf16.mxu0 0
    %357 = vmatpush1.bf16.msra.mxu0 0
    %358 = vmatprep.subr.bf16.mxu0 0
    %359 = vmatpush1.bf16.msra.mxu0 0
    %360 = vmatprep.subr.bf16.mxu0 0
    %361 = vmatpush1.bf16.msra.mxu0 0
    %362 = vmatprep.subr.bf16.mxu0 0
    %363 = vmatpush1.bf16.msra.mxu0 %v349
    %364 = vmatprep.subr.bf16.mxu0 0
    %365 = vmatpush1.bf16.msra.mxu0 %v348
    %366 = vmatprep.subr.bf16.mxu0 0
    %367 = vmatpush2.bf16.msra.mxu0 0
    %368 = vmatprep.subr.bf16.mxu0 0
    %369 = vmatpush2.bf16.msra.mxu0 0
    %370 = vmatprep.subr.bf16.mxu0 0
    %371 = vmatpush2.bf16.msra.mxu0 0
    %372 = vmatprep.subr.bf16.mxu0 0
    %373 = vmatpush2.bf16.msra.mxu0 0
    %374 = vmatprep.subr.bf16.mxu0 0
    %375 = vmatpush2.bf16.msra.mxu0 0
    %376 = vmatprep.subr.bf16.mxu0 0
    %377 = vmatpush2.bf16.msra.mxu0 0
    %378 = vmatprep.subr.bf16.mxu0 0
    %379 = vmatpush2.bf16.msra.mxu0 0
    %380 = vmatprep.subr.bf16.mxu0 0
    %381 = vmatpush2.bf16.msra.mxu0 0
    %382 = vmatprep.mubr.bf16.mxu0 0
    %383 = vmatmul.mubr.bf16.gmra.mxu0 %v142
    %v384 = vpop.f32.mrf.mxu0
    %v385 = vadd.f32 %v113, %v384
    %v386 = vpop.f32.mrf.mxu0
    %v387 = vpop.f32.mrf.mxu0
    %v388 = vadd.f32 %v118, %v387
    %v389 = vpop.f32.mrf.mxu0
    %390 = vmatprep.mubr.bf16.mxu0 0
    %391 = vmatmul.mubr.bf16.gmra.mxu0 %v145
    %v392 = vpop.f32.mrf.mxu0
    %v393 = vadd.f32 %v123, %v392
    %v394 = vpop.f32.mrf.mxu0
    %v395 = vpop.f32.mrf.mxu0
    %v396 = vadd.f32 %v128, %v395
    %v397 = vpop.f32.mrf.mxu0
    %398 = vdwg.mxu0
    %v399 = vmax.f32 %v385, 0.0
    %v400 = vmax.f32 %v388, 0.0
    %v401 = vmax.f32 %v393, 0.0
    %v402 = vmax.f32 %v396, 0.0
    %v403 = vmul.f32 %v399, %v203
    %v404 = vmul.f32 %v400, %v208
    %v405 = vmul.f32 %v401, %v213
    %v406 = vmul.f32 %v402, %v218
    %v407 = vadd.f32 %v403, %v404
    %v408 = vadd.f32 %v407, %v405
    %v409 = vadd.f32 %v408, %v406
    %v410 = vrot.slane %v409, 4
    %v411 = vadd.f32 %v409, %v410
    %v412 = vrot.slane %v411, 2
    %v413 = vadd.f32 %v411, %v412
    %v414 = vrot.slane %v413, 1
    %v415 = vadd.f32 %v413, %v414
    %v416 = vadd.f32 %v415, %v241
    %417 = vst [vmem:[#allocation3 + $0x2] sm:$0x1] %v416
    %v418 = vld [vmem:[%s0 + $0x3] sm:$0x1]
    %v419 = vlaneseq
    %v420 = vshrl.u32 %v419, 7
    %v421 = vsub.s32 0, %v420
    %v422 = vrot.slane %v418, %v421
    %v423 = vmul.f32 %v55, %v422
    %v424 = vmul.f32 %v60, %v422
    %v425 = vmul.f32 %v65, %v422
    %v426 = vmul.f32 %v70, %v422
    %v427 = vadd.f32 %v423, %v83
    %v428 = vadd.f32 %v424, %v88
    %v429 = vadd.f32 %v425, %v93
    %v430 = vadd.f32 %v426, %v98
    %v431 = vmax.f32 %v427, 0.0
    %v432 = vmax.f32 %v428, 0.0
    %v433 = vmax.f32 %v429, 0.0
    %v434 = vmax.f32 %v430, 0.0
    %v435 = vpack.c.bf16 %v432, %v431
    %v436 = vpack.c.bf16 %v434, %v433
    %437 = vmatprep.subr.bf16.mxu0 0
    %438 = vmatpush1.bf16.msra.mxu0 0
    %439 = vmatprep.subr.bf16.mxu0 0
    %440 = vmatpush1.bf16.msra.mxu0 0
    %441 = vmatprep.subr.bf16.mxu0 0
    %442 = vmatpush1.bf16.msra.mxu0 0
    %443 = vmatprep.subr.bf16.mxu0 0
    %444 = vmatpush1.bf16.msra.mxu0 0
    %445 = vmatprep.subr.bf16.mxu0 0
    %446 = vmatpush1.bf16.msra.mxu0 0
    %447 = vmatprep.subr.bf16.mxu0 0
    %448 = vmatpush1.bf16.msra.mxu0 0
    %449 = vmatprep.subr.bf16.mxu0 0
    %450 = vmatpush1.bf16.msra.mxu0 %v436
    %451 = vmatprep.subr.bf16.mxu0 0
    %452 = vmatpush1.bf16.msra.mxu0 %v435
    %453 = vmatprep.subr.bf16.mxu0 0
    %454 = vmatpush2.bf16.msra.mxu0 0
    %455 = vmatprep.subr.bf16.mxu0 0
    %456 = vmatpush2.bf16.msra.mxu0 0
    %457 = vmatprep.subr.bf16.mxu0 0
    %458 = vmatpush2.bf16.msra.mxu0 0
    %459 = vmatprep.subr.bf16.mxu0 0
    %460 = vmatpush2.bf16.msra.mxu0 0
    %461 = vmatprep.subr.bf16.mxu0 0
    %462 = vmatpush2.bf16.msra.mxu0 0
    %463 = vmatprep.subr.bf16.mxu0 0
    %464 = vmatpush2.bf16.msra.mxu0 0
    %465 = vmatprep.subr.bf16.mxu0 0
    %466 = vmatpush2.bf16.msra.mxu0 0
    %467 = vmatprep.subr.bf16.mxu0 0
    %468 = vmatpush2.bf16.msra.mxu0 0
    %469 = vmatprep.mubr.bf16.mxu0 0
    %470 = vmatmul.mubr.bf16.gmra.mxu0 %v142
    %v471 = vpop.f32.mrf.mxu0
    %v472 = vadd.f32 %v113, %v471
    %v473 = vpop.f32.mrf.mxu0
    %v474 = vpop.f32.mrf.mxu0
    %v475 = vadd.f32 %v118, %v474
    %v476 = vpop.f32.mrf.mxu0
    %477 = vmatprep.mubr.bf16.mxu0 0
    %478 = vmatmul.mubr.bf16.gmra.mxu0 %v145
    %v479 = vpop.f32.mrf.mxu0
    %v480 = vadd.f32 %v123, %v479
    %v481 = vpop.f32.mrf.mxu0
    %v482 = vpop.f32.mrf.mxu0
    %v483 = vadd.f32 %v128, %v482
    %v484 = vpop.f32.mrf.mxu0
    %485 = vdwg.mxu0
    %v486 = vmax.f32 %v472, 0.0
    %v487 = vmax.f32 %v475, 0.0
    %v488 = vmax.f32 %v480, 0.0
    %v489 = vmax.f32 %v483, 0.0
    %v490 = vmul.f32 %v486, %v203
    %v491 = vmul.f32 %v487, %v208
    %v492 = vmul.f32 %v488, %v213
    %v493 = vmul.f32 %v489, %v218
    %v494 = vadd.f32 %v490, %v491
    %v495 = vadd.f32 %v494, %v492
    %v496 = vadd.f32 %v495, %v493
    %v497 = vrot.slane %v496, 4
    %v498 = vadd.f32 %v496, %v497
    %v499 = vrot.slane %v498, 2
    %v500 = vadd.f32 %v498, %v499
    %v501 = vrot.slane %v500, 1
    %v502 = vadd.f32 %v500, %v501
    %v503 = vadd.f32 %v502, %v241
    %504 = vst [vmem:[#allocation3 + $0x3] sm:$0x1] %v503
    %v505 = vld [vmem:[%s0 + $0x4] sm:$0x1]
    %v506 = vlaneseq
    %v507 = vshrl.u32 %v506, 7
    %v508 = vsub.s32 0, %v507
    %v509 = vrot.slane %v505, %v508
    %v510 = vmul.f32 %v55, %v509
    %v511 = vmul.f32 %v60, %v509
    %v512 = vmul.f32 %v65, %v509
    %v513 = vmul.f32 %v70, %v509
    %v514 = vadd.f32 %v510, %v83
    %v515 = vadd.f32 %v511, %v88
    %v516 = vadd.f32 %v512, %v93
    %v517 = vadd.f32 %v513, %v98
    %v518 = vmax.f32 %v514, 0.0
    %v519 = vmax.f32 %v515, 0.0
    %v520 = vmax.f32 %v516, 0.0
    %v521 = vmax.f32 %v517, 0.0
    %v522 = vpack.c.bf16 %v519, %v518
    %v523 = vpack.c.bf16 %v521, %v520
    %524 = vmatprep.subr.bf16.mxu0 0
    %525 = vmatpush1.bf16.msra.mxu0 0
    %526 = vmatprep.subr.bf16.mxu0 0
    %527 = vmatpush1.bf16.msra.mxu0 0
    %528 = vmatprep.subr.bf16.mxu0 0
    %529 = vmatpush1.bf16.msra.mxu0 0
    %530 = vmatprep.subr.bf16.mxu0 0
    %531 = vmatpush1.bf16.msra.mxu0 0
    %532 = vmatprep.subr.bf16.mxu0 0
    %533 = vmatpush1.bf16.msra.mxu0 0
    %534 = vmatprep.subr.bf16.mxu0 0
    %535 = vmatpush1.bf16.msra.mxu0 0
    %536 = vmatprep.subr.bf16.mxu0 0
    %537 = vmatpush1.bf16.msra.mxu0 %v523
    %538 = vmatprep.subr.bf16.mxu0 0
    %539 = vmatpush1.bf16.msra.mxu0 %v522
    %540 = vmatprep.subr.bf16.mxu0 0
    %541 = vmatpush2.bf16.msra.mxu0 0
    %542 = vmatprep.subr.bf16.mxu0 0
    %543 = vmatpush2.bf16.msra.mxu0 0
    %544 = vmatprep.subr.bf16.mxu0 0
    %545 = vmatpush2.bf16.msra.mxu0 0
    %546 = vmatprep.subr.bf16.mxu0 0
    %547 = vmatpush2.bf16.msra.mxu0 0
    %548 = vmatprep.subr.bf16.mxu0 0
    %549 = vmatpush2.bf16.msra.mxu0 0
    %550 = vmatprep.subr.bf16.mxu0 0
    %551 = vmatpush2.bf16.msra.mxu0 0
    %552 = vmatprep.subr.bf16.mxu0 0
    %553 = vmatpush2.bf16.msra.mxu0 0
    %554 = vmatprep.subr.bf16.mxu0 0
    %555 = vmatpush2.bf16.msra.mxu0 0
    %556 = vmatprep.mubr.bf16.mxu0 0
    %557 = vmatmul.mubr.bf16.gmra.mxu0 %v142
    %v558 = vpop.f32.mrf.mxu0
    %v559 = vadd.f32 %v113, %v558
    %v560 = vpop.f32.mrf.mxu0
    %v561 = vpop.f32.mrf.mxu0
    %v562 = vadd.f32 %v118, %v561
    %v563 = vpop.f32.mrf.mxu0
    %564 = vmatprep.mubr.bf16.mxu0 0
    %565 = vmatmul.mubr.bf16.gmra.mxu0 %v145
    %v566 = vpop.f32.mrf.mxu0
    %v567 = vadd.f32 %v123, %v566
    %v568 = vpop.f32.mrf.mxu0
    %v569 = vpop.f32.mrf.mxu0
    %v570 = vadd.f32 %v128, %v569
    %v571 = vpop.f32.mrf.mxu0
    %572 = vdwg.mxu0
    %v573 = vmax.f32 %v559, 0.0
    %v574 = vmax.f32 %v562, 0.0
    %v575 = vmax.f32 %v567, 0.0
    %v576 = vmax.f32 %v570, 0.0
    %v577 = vmul.f32 %v573, %v203
    %v578 = vmul.f32 %v574, %v208
    %v579 = vmul.f32 %v575, %v213
    %v580 = vmul.f32 %v576, %v218
    %v581 = vadd.f32 %v577, %v578
    %v582 = vadd.f32 %v581, %v579
    %v583 = vadd.f32 %v582, %v580
    %v584 = vrot.slane %v583, 4
    %v585 = vadd.f32 %v583, %v584
    %v586 = vrot.slane %v585, 2
    %v587 = vadd.f32 %v585, %v586
    %v588 = vrot.slane %v587, 1
    %v589 = vadd.f32 %v587, %v588
    %v590 = vadd.f32 %v589, %v241
    %591 = vst [vmem:[#allocation3 + $0x4] sm:$0x1] %v590
    %v592 = vld [vmem:[%s0 + $0x5] sm:$0x1]
    %v593 = vlaneseq
    %v594 = vshrl.u32 %v593, 7
    %v595 = vsub.s32 0, %v594
    %v596 = vrot.slane %v592, %v595
    %v597 = vmul.f32 %v55, %v596
    %v598 = vmul.f32 %v60, %v596
    %v599 = vmul.f32 %v65, %v596
    %v600 = vmul.f32 %v70, %v596
    %v601 = vadd.f32 %v597, %v83
    %v602 = vadd.f32 %v598, %v88
    %v603 = vadd.f32 %v599, %v93
    %v604 = vadd.f32 %v600, %v98
    %v605 = vmax.f32 %v601, 0.0
    %v606 = vmax.f32 %v602, 0.0
    %v607 = vmax.f32 %v603, 0.0
    %v608 = vmax.f32 %v604, 0.0
    %v609 = vpack.c.bf16 %v606, %v605
    %v610 = vpack.c.bf16 %v608, %v607
    %611 = vmatprep.subr.bf16.mxu0 0
    %612 = vmatpush1.bf16.msra.mxu0 0
    %613 = vmatprep.subr.bf16.mxu0 0
    %614 = vmatpush1.bf16.msra.mxu0 0
    %615 = vmatprep.subr.bf16.mxu0 0
    %616 = vmatpush1.bf16.msra.mxu0 0
    %617 = vmatprep.subr.bf16.mxu0 0
    %618 = vmatpush1.bf16.msra.mxu0 0
    %619 = vmatprep.subr.bf16.mxu0 0
    %620 = vmatpush1.bf16.msra.mxu0 0
    %621 = vmatprep.subr.bf16.mxu0 0
    %622 = vmatpush1.bf16.msra.mxu0 0
    %623 = vmatprep.subr.bf16.mxu0 0
    %624 = vmatpush1.bf16.msra.mxu0 %v610
    %625 = vmatprep.subr.bf16.mxu0 0
    %626 = vmatpush1.bf16.msra.mxu0 %v609
    %627 = vmatprep.subr.bf16.mxu0 0
    %628 = vmatpush2.bf16.msra.mxu0 0
    %629 = vmatprep.subr.bf16.mxu0 0
    %630 = vmatpush2.bf16.msra.mxu0 0
    %631 = vmatprep.subr.bf16.mxu0 0
    %632 = vmatpush2.bf16.msra.mxu0 0
    %633 = vmatprep.subr.bf16.mxu0 0
    %634 = vmatpush2.bf16.msra.mxu0 0
    %635 = vmatprep.subr.bf16.mxu0 0
    %636 = vmatpush2.bf16.msra.mxu0 0
    %637 = vmatprep.subr.bf16.mxu0 0
    %638 = vmatpush2.bf16.msra.mxu0 0
    %639 = vmatprep.subr.bf16.mxu0 0
    %640 = vmatpush2.bf16.msra.mxu0 0
    %641 = vmatprep.subr.bf16.mxu0 0
    %642 = vmatpush2.bf16.msra.mxu0 0
    %643 = vmatprep.mubr.bf16.mxu0 0
    %644 = vmatmul.mubr.bf16.gmra.mxu0 %v142
    %v645 = vpop.f32.mrf.mxu0
    %v646 = vadd.f32 %v113, %v645
    %v647 = vpop.f32.mrf.mxu0
    %v648 = vpop.f32.mrf.mxu0
    %v649 = vadd.f32 %v118, %v648
    %v650 = vpop.f32.mrf.mxu0
    %651 = vmatprep.mubr.bf16.mxu0 0
    %652 = vmatmul.mubr.bf16.gmra.mxu0 %v145
    %v653 = vpop.f32.mrf.mxu0
    %v654 = vadd.f32 %v123, %v653
    %v655 = vpop.f32.mrf.mxu0
    %v656 = vpop.f32.mrf.mxu0
    %v657 = vadd.f32 %v128, %v656
    %v658 = vpop.f32.mrf.mxu0
    %659 = vdwg.mxu0
    %v660 = vmax.f32 %v646, 0.0
    %v661 = vmax.f32 %v649, 0.0
    %v662 = vmax.f32 %v654, 0.0
    %v663 = vmax.f32 %v657, 0.0
    %v664 = vmul.f32 %v660, %v203
    %v665 = vmul.f32 %v661, %v208
    %v666 = vmul.f32 %v662, %v213
    %v667 = vmul.f32 %v663, %v218
    %v668 = vadd.f32 %v664, %v665
    %v669 = vadd.f32 %v668, %v666
    %v670 = vadd.f32 %v669, %v667
    %v671 = vrot.slane %v670, 4
    %v672 = vadd.f32 %v670, %v671
    %v673 = vrot.slane %v672, 2
    %v674 = vadd.f32 %v672, %v673
    %v675 = vrot.slane %v674, 1
    %v676 = vadd.f32 %v674, %v675
    %v677 = vadd.f32 %v676, %v241
    %678 = vst [vmem:[#allocation3 + $0x5] sm:$0x1] %v677
    %v679 = vld [vmem:[%s0 + $0x6] sm:$0x1]
    %v680 = vlaneseq
    %v681 = vshrl.u32 %v680, 7
    %v682 = vsub.s32 0, %v681
    %v683 = vrot.slane %v679, %v682
    %v684 = vmul.f32 %v55, %v683
    %v685 = vmul.f32 %v60, %v683
    %v686 = vmul.f32 %v65, %v683
    %v687 = vmul.f32 %v70, %v683
    %v688 = vadd.f32 %v684, %v83
    %v689 = vadd.f32 %v685, %v88
    %v690 = vadd.f32 %v686, %v93
    %v691 = vadd.f32 %v687, %v98
    %v692 = vmax.f32 %v688, 0.0
    %v693 = vmax.f32 %v689, 0.0
    %v694 = vmax.f32 %v690, 0.0
    %v695 = vmax.f32 %v691, 0.0
    %v696 = vpack.c.bf16 %v693, %v692
    %v697 = vpack.c.bf16 %v695, %v694
    %698 = vmatprep.subr.bf16.mxu0 0
    %699 = vmatpush1.bf16.msra.mxu0 0
    %700 = vmatprep.subr.bf16.mxu0 0
    %701 = vmatpush1.bf16.msra.mxu0 0
    %702 = vmatprep.subr.bf16.mxu0 0
    %703 = vmatpush1.bf16.msra.mxu0 0
    %704 = vmatprep.subr.bf16.mxu0 0
    %705 = vmatpush1.bf16.msra.mxu0 0
    %706 = vmatprep.subr.bf16.mxu0 0
    %707 = vmatpush1.bf16.msra.mxu0 0
    %708 = vmatprep.subr.bf16.mxu0 0
    %709 = vmatpush1.bf16.msra.mxu0 0
    %710 = vmatprep.subr.bf16.mxu0 0
    %711 = vmatpush1.bf16.msra.mxu0 %v697
    %712 = vmatprep.subr.bf16.mxu0 0
    %713 = vmatpush1.bf16.msra.mxu0 %v696
    %714 = vmatprep.subr.bf16.mxu0 0
    %715 = vmatpush2.bf16.msra.mxu0 0
    %716 = vmatprep.subr.bf16.mxu0 0
    %717 = vmatpush2.bf16.msra.mxu0 0
    %718 = vmatprep.subr.bf16.mxu0 0
    %719 = vmatpush2.bf16.msra.mxu0 0
    %720 = vmatprep.subr.bf16.mxu0 0
    %721 = vmatpush2.bf16.msra.mxu0 0
    %722 = vmatprep.subr.bf16.mxu0 0
    %723 = vmatpush2.bf16.msra.mxu0 0
    %724 = vmatprep.subr.bf16.mxu0 0
    %725 = vmatpush2.bf16.msra.mxu0 0
    %726 = vmatprep.subr.bf16.mxu0 0
    %727 = vmatpush2.bf16.msra.mxu0 0
    %728 = vmatprep.subr.bf16.mxu0 0
    %729 = vmatpush2.bf16.msra.mxu0 0
    %730 = vmatprep.mubr.bf16.mxu0 0
    %731 = vmatmul.mubr.bf16.gmra.mxu0 %v142
    %v732 = vpop.f32.mrf.mxu0
    %v733 = vadd.f32 %v113, %v732
    %v734 = vpop.f32.mrf.mxu0
    %v735 = vpop.f32.mrf.mxu0
    %v736 = vadd.f32 %v118, %v735
    %v737 = vpop.f32.mrf.mxu0
    %738 = vmatprep.mubr.bf16.mxu0 0
    %739 = vmatmul.mubr.bf16.gmra.mxu0 %v145
    %v740 = vpop.f32.mrf.mxu0
    %v741 = vadd.f32 %v123, %v740
    %v742 = vpop.f32.mrf.mxu0
    %v743 = vpop.f32.mrf.mxu0
    %v744 = vadd.f32 %v128, %v743
    %v745 = vpop.f32.mrf.mxu0
    %746 = vdwg.mxu0
    %v747 = vmax.f32 %v733, 0.0
    %v748 = vmax.f32 %v736, 0.0
    %v749 = vmax.f32 %v741, 0.0
    %v750 = vmax.f32 %v744, 0.0
    %v751 = vmul.f32 %v747, %v203
    %v752 = vmul.f32 %v748, %v208
    %v753 = vmul.f32 %v749, %v213
    %v754 = vmul.f32 %v750, %v218
    %v755 = vadd.f32 %v751, %v752
    %v756 = vadd.f32 %v755, %v753
    %v757 = vadd.f32 %v756, %v754
    %v758 = vrot.slane %v757, 4
    %v759 = vadd.f32 %v757, %v758
    %v760 = vrot.slane %v759, 2
    %v761 = vadd.f32 %v759, %v760
    %v762 = vrot.slane %v761, 1
    %v763 = vadd.f32 %v761, %v762
    %v764 = vadd.f32 %v763, %v241
    %765 = vst [vmem:[#allocation3 + $0x6] sm:$0x1] %v764
    %v766 = vld [vmem:[%s0 + $0x7] sm:$0x1]
    %v767 = vlaneseq
    %v768 = vshrl.u32 %v767, 7
    %v769 = vsub.s32 0, %v768
    %v770 = vrot.slane %v766, %v769
    %v771 = vmul.f32 %v55, %v770
    %v772 = vmul.f32 %v60, %v770
    %v773 = vmul.f32 %v65, %v770
    %v774 = vmul.f32 %v70, %v770
    %v775 = vadd.f32 %v771, %v83
    %v776 = vadd.f32 %v772, %v88
    %v777 = vadd.f32 %v773, %v93
    %v778 = vadd.f32 %v774, %v98
    %v779 = vmax.f32 %v775, 0.0
    %v780 = vmax.f32 %v776, 0.0
    %v781 = vmax.f32 %v777, 0.0
    %v782 = vmax.f32 %v778, 0.0
    %v783 = vpack.c.bf16 %v780, %v779
    %v784 = vpack.c.bf16 %v782, %v781
    %785 = vmatprep.subr.bf16.mxu0 0
    %786 = vmatpush1.bf16.msra.mxu0 0
    %787 = vmatprep.subr.bf16.mxu0 0
    %788 = vmatpush1.bf16.msra.mxu0 0
    %789 = vmatprep.subr.bf16.mxu0 0
    %790 = vmatpush1.bf16.msra.mxu0 0
    %791 = vmatprep.subr.bf16.mxu0 0
    %792 = vmatpush1.bf16.msra.mxu0 0
    %793 = vmatprep.subr.bf16.mxu0 0
    %794 = vmatpush1.bf16.msra.mxu0 0
    %795 = vmatprep.subr.bf16.mxu0 0
    %796 = vmatpush1.bf16.msra.mxu0 0
    %797 = vmatprep.subr.bf16.mxu0 0
    %798 = vmatpush1.bf16.msra.mxu0 %v784
    %799 = vmatprep.subr.bf16.mxu0 0
    %800 = vmatpush1.bf16.msra.mxu0 %v783
    %801 = vmatprep.subr.bf16.mxu0 0
    %802 = vmatpush2.bf16.msra.mxu0 0
    %803 = vmatprep.subr.bf16.mxu0 0
    %804 = vmatpush2.bf16.msra.mxu0 0
    %805 = vmatprep.subr.bf16.mxu0 0
    %806 = vmatpush2.bf16.msra.mxu0 0
    %807 = vmatprep.subr.bf16.mxu0 0
    %808 = vmatpush2.bf16.msra.mxu0 0
    %809 = vmatprep.subr.bf16.mxu0 0
    %810 = vmatpush2.bf16.msra.mxu0 0
    %811 = vmatprep.subr.bf16.mxu0 0
    %812 = vmatpush2.bf16.msra.mxu0 0
    %813 = vmatprep.subr.bf16.mxu0 0
    %814 = vmatpush2.bf16.msra.mxu0 0
    %815 = vmatprep.subr.bf16.mxu0 0
    %816 = vmatpush2.bf16.msra.mxu0 0
    %817 = vmatprep.mubr.bf16.mxu0 0
    %818 = vmatmul.mubr.bf16.gmra.mxu0 %v142
    %v819 = vpop.f32.mrf.mxu0
    %v820 = vadd.f32 %v113, %v819
    %v821 = vpop.f32.mrf.mxu0
    %v822 = vpop.f32.mrf.mxu0
    %v823 = vadd.f32 %v118, %v822
    %v824 = vpop.f32.mrf.mxu0
    %825 = vmatprep.mubr.bf16.mxu0 0
    %826 = vmatmul.mubr.bf16.gmra.mxu0 %v145
    %v827 = vpop.f32.mrf.mxu0
    %v828 = vadd.f32 %v123, %v827
    %v829 = vpop.f32.mrf.mxu0
    %v830 = vpop.f32.mrf.mxu0
    %v831 = vadd.f32 %v128, %v830
    %v832 = vpop.f32.mrf.mxu0
    %833 = vdwg.mxu0
    %v834 = vmax.f32 %v820, 0.0
    %v835 = vmax.f32 %v823, 0.0
    %v836 = vmax.f32 %v828, 0.0
    %v837 = vmax.f32 %v831, 0.0
    %v838 = vmul.f32 %v834, %v203
    %v839 = vmul.f32 %v835, %v208
    %v840 = vmul.f32 %v836, %v213
    %v841 = vmul.f32 %v837, %v218
    %v842 = vadd.f32 %v838, %v839
    %v843 = vadd.f32 %v842, %v840
    %v844 = vadd.f32 %v843, %v841
    %v845 = vrot.slane %v844, 4
    %v846 = vadd.f32 %v844, %v845
    %v847 = vrot.slane %v846, 2
    %v848 = vadd.f32 %v846, %v847
    %v849 = vrot.slane %v848, 1
    %v850 = vadd.f32 %v848, %v849
    %v851 = vadd.f32 %v850, %v241
    %852 = vst [vmem:[#allocation3 + $0x7] sm:$0x1] %v851
    // Predicated region
    $region30: #{tpu_custom_call.1} parent=1 // pred_check
      _
    $region31: #{tpu_custom_call.1} parent=1 // pred_check_branch
      %854 = sbr.rel (0) target = $region33
    $region32: #{tpu_custom_call.1} parent=1 // pred_region
      %s856 = ssub.s32 128, 128
      %857 = vsyncadd [#allocation4], %s856
      %s859 = sshll.u32 [#allocation3], 4
      %s860 = int_to_ptr.vmem [resolvable:$true] %s859
      %862 = dma.vmem_to_hbm [thread:$0]  %s860, 128, %s7, [#allocation4]
    $region33: #{tpu_custom_call.1} parent=1 // pred_fallthru
      _
    // Predicated region
    $region34: #{tpu_custom_call.1} parent=1 // pred_check
      _
    $region35: #{tpu_custom_call.1} parent=1 // pred_check_branch
      %864 = sbr.rel (0) target = $region37
    $region36: #{tpu_custom_call.1} parent=1 // pred_region
      %865 = dma.done [#allocation4], 128
    $region37: #{tpu_custom_call.1} parent=1 // pred_fallthru
      _
    %866 = vsyncpa [#allocation4], 1

</llo_original>
